<compile_context>
chip_gen: v6e
topology: v6e:2x2x1
jax: 0.10.0
libtpu: 0.0.40
codegen_flags: <defaults>
</compile_context>

<pallas_src>
import functools
import math

import jax
import jax.numpy as jnp
from jax.experimental import pallas as pl
from jax.experimental.pallas import tpu as pltpu


def attn_encoder_cell_kernel(*refs, n_layers, prior_gamma, use_prior):
    if use_prior:
        (attn_ref, hx0_ref, cx0_ref, prior_ref,
         wa_ref, wh_ref, v_ref, w_ref, b_ref,
         hx_ref, cx_ref, aw_ref) = refs
    else:
        (attn_ref, hx0_ref, cx0_ref,
         wa_ref, wh_ref, v_ref, w_ref, b_ref,
         hx_ref, cx_ref, aw_ref) = refs
        prior_ref = None

    B, N, A = attn_ref.shape
    H = wh_ref.shape[0]

    attn = attn_ref[...]                                  # [B, N, A]
    prev = hx0_ref[n_layers - 1]                          # [B, H] == hidden[0][-1]

    # attn_weights = attn @ Wa + prev_out @ Wh   (broadcast over N on sublanes)
    e1 = jnp.dot(attn.reshape(B * N, A), wa_ref[...],
                 preferred_element_type=jnp.float32).reshape(B, N, H)
    e2 = jnp.dot(prev, wh_ref[...], preferred_element_type=jnp.float32)   # [B, H]
    e = jnp.tanh(e1 + e2[:, None, :])                     # [B, N, H]

    # tanh(.) @ v -> [B, N]   (v kept as a [1,H] row; lane reduction on the XLU)
    logits = jnp.sum(e * v_ref[...][None, :, :], axis=-1)

    # softmax over N (dim=0 of the original [N, B] layout == axis 1 here)
    m = jnp.max(logits, axis=1, keepdims=True)
    w = jnp.exp(logits - m)
    w = w / jnp.sum(w, axis=1, keepdims=True)

    # prior weighting: w * prior_map ** gamma  (specialized / skipped when no prior)
    if use_prior:
        prior = prior_ref[...]
        if prior_gamma == 0.5:
            pw = jnp.sqrt(prior)
        elif prior_gamma == 1.0:
            pw = prior
        else:
            pw = jnp.power(prior, prior_gamma)
        w = w * pw

    # weighted pooling over N, normalized by the clamped weight sum
    num = jnp.sum(w[:, :, None] * attn, axis=1)                    # [B, A]
    den = jnp.maximum(jnp.sum(w, axis=1, keepdims=True), 1e-5)     # [B, 1]
    s = num / den                                                  # [B, A]

    # n_layers applications of the (shared) LSTMCell; PyTorch gate order i,f,g,o.
    # Fused gate matmul: gates = [x, h] @ [W_ih; W_hh] + (b_ih + b_hh).
    bias = b_ref[...]                                     # hoisted out of the loop
    output = s
    for i in range(n_layers):
        h_prev = hx0_ref[i]
        c_prev = cx0_ref[i]
        xh = jnp.concatenate([output, h_prev], axis=-1)   # [B, A+H]
        gates = jnp.dot(xh, w_ref[...],
                        preferred_element_type=jnp.float32) + bias   # [B, 4H]
        sig = jax.nn.sigmoid(gates)                       # one full-vreg EUP call
        th = jnp.tanh(gates)                              # one full-vreg EUP call
        ig = sig[:, 0 * H:1 * H]
        fg = sig[:, 1 * H:2 * H]
        gg = th[:, 2 * H:3 * H]
        og = sig[:, 3 * H:4 * H]
        c = fg * c_prev + ig * gg
        h = og * jnp.tanh(c)
        hx_ref[i] = h
        cx_ref[i] = c
        output = h

    aw_ref[...] = w


@functools.partial(jax.jit, static_argnames=("n_layers", "prior_gamma"))
def attn_encoder_cell(attn, hidden, params, *, n_layers, prior_gamma, prior_map=None):
    """Pallas implementation of AttnEncoderCell.forward (cell='LSTM').

    attn: [N, B, A], hidden: ([L, B, H], [L, B, H]), prior_map: [N, B] or None.
    Returns (output [B,H], (hx [L,B,H], cx [L,B,H]), attn_weights [N,B]).
    """
    hx0, cx0 = hidden
    N, B, A = attn.shape
    L, _, H = hx0.shape
    assert L == n_layers
    wa, wh, v_row, wih, whh, b = params

    # Relayout so N lives on sublanes inside the kernel (dense vreg packing).
    attn_bna = jnp.transpose(attn, (1, 0, 2))             # [B, N, A]
    # Fuse the two LSTMCell matmuls into one weight.
    w_fused = jnp.concatenate([wih, whh], axis=0)         # [A+H, 4H]

    use_prior = prior_map is not None
    inputs = [attn_bna, hx0, cx0]
    if use_prior:
        inputs.append(jnp.transpose(prior_map, (1, 0)))   # [B, N]
    inputs += [wa, wh, v_row, w_fused, b]

    kernel = functools.partial(
        attn_encoder_cell_kernel,
        n_layers=n_layers, prior_gamma=float(prior_gamma), use_prior=use_prior)

    vmem = pl.BlockSpec(memory_space=pltpu.MemorySpace.VMEM)
    out_shapes = (
        jax.ShapeDtypeStruct((n_layers, B, H), jnp.float32),   # hx
        jax.ShapeDtypeStruct((n_layers, B, H), jnp.float32),   # cx
        jax.ShapeDtypeStruct((B, N), jnp.float32),             # attn weights (B-major)
    )
    hx, cx, aw_bn = pl.pallas_call(
        kernel,
        out_shape=out_shapes,
        in_specs=[vmem] * len(inputs),
        out_specs=(vmem, vmem, vmem),
        # hx0 -> hx, cx0 -> cx (read-before-write holds per layer slot).
        input_output_aliases={1: 0, 2: 1},
    )(*inputs)

    output = hx[n_layers - 1]                              # == old out_ref, for free
    return output, (hx, cx), jnp.transpose(aw_bn, (1, 0))


def reference(attn, hidden, params, *, n_layers, prior_gamma, prior_map):
    """Pure-JAX re-implementation of the PyTorch forward, for checking."""
    hx0, cx0 = hidden
    N, B, A = attn.shape
    H = hx0.shape[-1]
    wa, wh, v_row, wih, whh, b = params

    prev = hx0[-1]
    e = attn.reshape(-1, A) @ wa
    e = e.reshape(N, B, H) + prev @ wh
    logits = (jnp.tanh(e).reshape(-1, H) @ v_row.T).reshape(N, B)
    w = jax.nn.softmax(logits, axis=0)
    if prior_map is not None:
        w = w * prior_map ** prior_gamma
    s = (w[:, :, None] * attn).sum(0) / jnp.clip(w.sum(0), 1e-5, None)[:, None]

    output = s
    hx, cx = [], []
    for i in range(n_layers):
        gates = output @ wih + hx0[i] @ whh + b
        ig = jax.nn.sigmoid(gates[:, 0 * H:1 * H])
        fg = jax.nn.sigmoid(gates[:, 1 * H:2 * H])
        gg = jnp.tanh(gates[:, 2 * H:3 * H])
        og = jax.nn.sigmoid(gates[:, 3 * H:4 * H])
        c = fg * cx0[i] + ig * gg
        h = og * jnp.tanh(c)
        hx.append(h); cx.append(c)
        output = h
    return output, (jnp.stack(hx, 0), jnp.stack(cx, 0)), w


if __name__ == "__main__":
    # Small shapes consistent with the module. n_layers>1 reuses the same LSTMCell,
    # so attn_size must equal hidden_size (as in the original PyTorch code path).
    N, B = 8, 2
    A = H = 32
    L = 2
    PRIOR_GAMMA = 0.5

    key = jax.random.PRNGKey(0)
    ks = jax.random.split(key, 10)

    attn = jax.random.normal(ks[0], (N, B, A), jnp.float32)
    hx0 = jax.random.normal(ks[1], (L, B, H), jnp.float32)
    cx0 = jax.random.normal(ks[2], (L, B, H), jnp.float32)
    prior_map = jax.random.uniform(ks[3], (N, B), jnp.float32, 0.1, 1.0)

    # Parameters (deterministic synthetic init; shapes per the module __init__).
    # torch: v [H,1] (xavier-uniform), Wa [A,H], Wh [H,H], LSTMCell W_ih [4H,A],
    # W_hh [4H,H], b_ih/b_hh [4H]. Transposed where convenient for x @ W layout.
    bnd_v = math.sqrt(6.0 / (H + 1))
    v_row = jax.random.uniform(ks[4], (1, H), jnp.float32, -bnd_v, bnd_v)
    wa = 0.1 * jax.random.normal(ks[5], (A, H), jnp.float32)
    wh = 0.1 * jax.random.normal(ks[6], (H, H), jnp.float32)
    bnd = 1.0 / math.sqrt(H)
    wih = jax.random.uniform(ks[7], (A, 4 * H), jnp.float32, -bnd, bnd)
    whh = jax.random.uniform(ks[8], (H, 4 * H), jnp.float32, -bnd, bnd)
    b = jax.random.uniform(ks[9], (1, 4 * H), jnp.float32, -bnd, bnd)  # b_ih + b_hh

    params = (wa, wh, v_row, wih, whh, b)

    # Pure-JAX reference of the PyTorch forward (computed first, then the kernel).
    r_out, (r_hx, r_cx), r_aw = reference(
        attn, (hx0, cx0), params,
        n_layers=L, prior_gamma=PRIOR_GAMMA, prior_map=prior_map)

    out, (hx, cx), aw = attn_encoder_cell(
        attn, (hx0, cx0), params,
        n_layers=L, prior_gamma=PRIOR_GAMMA, prior_map=prior_map)
    jax.block_until_ready((out, hx, cx, aw))

    assert jnp.allclose(out, r_out, atol=1e-4, rtol=1e-4)
    assert jnp.allclose(hx, r_hx, atol=1e-4, rtol=1e-4)
    assert jnp.allclose(cx, r_cx, atol=1e-4, rtol=1e-4)
    assert jnp.allclose(aw, r_aw, atol=1e-4, rtol=1e-4)

    # Also exercise the prior_map=None specialization (no prior input, no pow).
    out2, (hx2, cx2), aw2 = attn_encoder_cell(
        attn, (hx0, cx0), params,
        n_layers=L, prior_gamma=PRIOR_GAMMA, prior_map=None)
    r_out2, (r_hx2, r_cx2), r_aw2 = reference(
        attn, (hx0, cx0), params,
        n_layers=L, prior_gamma=PRIOR_GAMMA, prior_map=None)
    jax.block_until_ready((out2, hx2, cx2, aw2))
    assert jnp.allclose(out2, r_out2, atol=1e-4, rtol=1e-4)
    assert jnp.allclose(aw2, r_aw2, atol=1e-4, rtol=1e-4)

    print("KERNEL_OK")
</pallas_src>

<mosaic_0001>
module attributes {stable_mosaic.version = 11 : i64} {
  func.func @attn_encoder_cell_kernel(%arg0: memref<2x8x32xf32, #tpu.memory_space<vmem>>, %arg1: memref<2x2x32xf32, #tpu.memory_space<vmem>>, %arg2: memref<2x2x32xf32, #tpu.memory_space<vmem>>, %arg3: memref<2x8xf32, #tpu.memory_space<vmem>>, %arg4: memref<32x32xf32, #tpu.memory_space<vmem>>, %arg5: memref<32x32xf32, #tpu.memory_space<vmem>>, %arg6: memref<1x32xf32, #tpu.memory_space<vmem>>, %arg7: memref<64x128xf32, #tpu.memory_space<vmem>>, %arg8: memref<1x128xf32, #tpu.memory_space<vmem>>, %arg9: memref<2x2x32xf32, #tpu.memory_space<vmem>>, %arg10: memref<2x2x32xf32, #tpu.memory_space<vmem>>, %arg11: memref<2x8xf32, #tpu.memory_space<vmem>>) attributes {dimension_semantics = [], scalar_prefetch = 0 : i64, scratch_operands = 0 : i64, tpu.core_type = #tpu.core_type<tc>} {
    %c0 = arith.constant 0 : index
    %c0_0 = arith.constant 0 : index
    %c0_1 = arith.constant 0 : index
    %0 = vector.load %arg0[%c0, %c0_0, %c0_1] : memref<2x8x32xf32, #tpu.memory_space<vmem>>, vector<2x8x32xf32>
    %c1 = arith.constant 1 : index
    %c0_2 = arith.constant 0 : index
    %c0_3 = arith.constant 0 : index
    %1 = vector.load %arg1[%c1, %c0_2, %c0_3] : memref<2x2x32xf32, #tpu.memory_space<vmem>>, vector<1x2x32xf32>
    %2 = vector.shape_cast %1 : vector<1x2x32xf32> to vector<2x32xf32>
    %3 = vector.shape_cast %0 : vector<2x8x32xf32> to vector<16x32xf32>
    %c0_4 = arith.constant 0 : index
    %c0_5 = arith.constant 0 : index
    %4 = vector.load %arg4[%c0_4, %c0_5] : memref<32x32xf32, #tpu.memory_space<vmem>>, vector<32x32xf32>
    %cst = arith.constant dense<0.000000e+00> : vector<16x32xf32>
    %5 = tpu.matmul %3, %4, %cst {dimension_numbers = #tpu.dot_dimension_numbers<[1], [0], [0], [1], [0, 0, 1, 1], [], []>} : vector<16x32xf32>, vector<32x32xf32>, vector<16x32xf32> -> vector<16x32xf32>
    %6 = vector.shape_cast %5 : vector<16x32xf32> to vector<2x8x32xf32>
    %c0_6 = arith.constant 0 : index
    %c0_7 = arith.constant 0 : index
    %7 = vector.load %arg5[%c0_6, %c0_7] : memref<32x32xf32, #tpu.memory_space<vmem>>, vector<32x32xf32>
    %cst_8 = arith.constant dense<0.000000e+00> : vector<2x32xf32>
    %8 = tpu.matmul %2, %7, %cst_8 {dimension_numbers = #tpu.dot_dimension_numbers<[1], [0], [0], [1], [0, 0, 1, 1], [], []>} : vector<2x32xf32>, vector<32x32xf32>, vector<2x32xf32> -> vector<2x32xf32>
    %9 = vector.shape_cast %8 : vector<2x32xf32> to vector<2x1x32xf32>
    %10 = vector.broadcast %9 : vector<2x1x32xf32> to vector<2x8x32xf32>
    %11 = arith.addf %6, %10 : vector<2x8x32xf32>
    %12 = math.tanh %11 : vector<2x8x32xf32>
    %c0_9 = arith.constant 0 : index
    %c0_10 = arith.constant 0 : index
    %13 = vector.load %arg6[%c0_9, %c0_10] : memref<1x32xf32, #tpu.memory_space<vmem>>, vector<1x32xf32>
    %14 = vector.shape_cast %13 : vector<1x32xf32> to vector<1x1x32xf32>
    %15 = vector.broadcast %14 : vector<1x1x32xf32> to vector<2x8x32xf32>
    %16 = arith.mulf %12, %15 : vector<2x8x32xf32>
    %cst_11 = arith.constant dense<0.000000e+00> : vector<2x8xf32>
    %17 = vector.multi_reduction <add>, %16, %cst_11 [2] : vector<2x8x32xf32> to vector<2x8xf32>
    %cst_12 = arith.constant dense<0xFF800000> : vector<2xf32>
    %18 = vector.multi_reduction <maximumf>, %17, %cst_12 [1] : vector<2x8xf32> to vector<2xf32>
    %19 = vector.shape_cast %18 : vector<2xf32> to vector<2x1xf32>
    %20 = vector.broadcast %19 : vector<2x1xf32> to vector<2x8xf32>
    %21 = arith.subf %17, %20 : vector<2x8xf32>
    %22 = math.exp %21 : vector<2x8xf32>
    %cst_13 = arith.constant dense<0.000000e+00> : vector<2xf32>
    %23 = vector.multi_reduction <add>, %22, %cst_13 [1] : vector<2x8xf32> to vector<2xf32>
    %24 = vector.shape_cast %23 : vector<2xf32> to vector<2x1xf32>
    %25 = vector.broadcast %24 : vector<2x1xf32> to vector<2x8xf32>
    %26 = arith.divf %22, %25 : vector<2x8xf32>
    %c0_14 = arith.constant 0 : index
    %c0_15 = arith.constant 0 : index
    %27 = vector.load %arg3[%c0_14, %c0_15] : memref<2x8xf32, #tpu.memory_space<vmem>>, vector<2x8xf32>
    %28 = math.sqrt %27 : vector<2x8xf32>
    %29 = arith.mulf %26, %28 : vector<2x8xf32>
    %30 = vector.shape_cast %29 : vector<2x8xf32> to vector<2x8x1xf32>
    %31 = vector.broadcast %30 : vector<2x8x1xf32> to vector<2x8x32xf32>
    %32 = arith.mulf %31, %0 : vector<2x8x32xf32>
    %cst_16 = arith.constant dense<0.000000e+00> : vector<2x32xf32>
    %33 = vector.multi_reduction <add>, %32, %cst_16 [1] : vector<2x8x32xf32> to vector<2x32xf32>
    %cst_17 = arith.constant dense<0.000000e+00> : vector<2xf32>
    %34 = vector.multi_reduction <add>, %29, %cst_17 [1] : vector<2x8xf32> to vector<2xf32>
    %35 = vector.shape_cast %34 : vector<2xf32> to vector<2x1xf32>
    %cst_18 = arith.constant 9.99999974E-6 : f32
    %36 = vector.broadcast %cst_18 : f32 to vector<2x1xf32>
    %37 = arith.maximumf %35, %36 : vector<2x1xf32>
    %38 = vector.broadcast %37 : vector<2x1xf32> to vector<2x32xf32>
    %39 = arith.divf %33, %38 : vector<2x32xf32>
    %c0_19 = arith.constant 0 : index
    %c0_20 = arith.constant 0 : index
    %40 = vector.load %arg8[%c0_19, %c0_20] : memref<1x128xf32, #tpu.memory_space<vmem>>, vector<1x128xf32>
    %c0_21 = arith.constant 0 : index
    %c0_22 = arith.constant 0 : index
    %c0_23 = arith.constant 0 : index
    %41 = vector.load %arg1[%c0_21, %c0_22, %c0_23] : memref<2x2x32xf32, #tpu.memory_space<vmem>>, vector<1x2x32xf32>
    %42 = vector.shape_cast %41 : vector<1x2x32xf32> to vector<2x32xf32>
    %c0_24 = arith.constant 0 : index
    %c0_25 = arith.constant 0 : index
    %c0_26 = arith.constant 0 : index
    %43 = vector.load %arg2[%c0_24, %c0_25, %c0_26] : memref<2x2x32xf32, #tpu.memory_space<vmem>>, vector<1x2x32xf32>
    %44 = vector.shape_cast %43 : vector<1x2x32xf32> to vector<2x32xf32>
    %45 = tpu.concatenate %39, %42 in 1 : vector<2x32xf32>, vector<2x32xf32> -> vector<2x64xf32>
    %c0_27 = arith.constant 0 : index
    %c0_28 = arith.constant 0 : index
    %46 = vector.load %arg7[%c0_27, %c0_28] : memref<64x128xf32, #tpu.memory_space<vmem>>, vector<64x128xf32>
    %cst_29 = arith.constant dense<0.000000e+00> : vector<2x128xf32>
    %47 = tpu.matmul %45, %46, %cst_29 {dimension_numbers = #tpu.dot_dimension_numbers<[1], [0], [0], [1], [0, 0, 1, 1], [], []>} : vector<2x64xf32>, vector<64x128xf32>, vector<2x128xf32> -> vector<2x128xf32>
    %48 = vector.broadcast %40 : vector<1x128xf32> to vector<2x128xf32>
    %49 = arith.addf %47, %48 : vector<2x128xf32>
    %50 = arith.negf %49 : vector<2x128xf32>
    %51 = math.exp %50 : vector<2x128xf32>
    %cst_30 = arith.constant 1.000000e+00 : f32
    %52 = vector.broadcast %cst_30 : f32 to vector<2x128xf32>
    %53 = arith.addf %52, %51 : vector<2x128xf32>
    %54 = arith.divf %52, %53 : vector<2x128xf32>
    %55 = math.tanh %49 : vector<2x128xf32>
    %56 = vector.extract_strided_slice %54 {offsets = [0, 0], sizes = [2, 32], strides = [1, 1]} : vector<2x128xf32> to vector<2x32xf32>
    %57 = vector.extract_strided_slice %54 {offsets = [0, 32], sizes = [2, 32], strides = [1, 1]} : vector<2x128xf32> to vector<2x32xf32>
    %58 = vector.extract_strided_slice %55 {offsets = [0, 64], sizes = [2, 32], strides = [1, 1]} : vector<2x128xf32> to vector<2x32xf32>
    %59 = vector.extract_strided_slice %54 {offsets = [0, 96], sizes = [2, 32], strides = [1, 1]} : vector<2x128xf32> to vector<2x32xf32>
    %60 = arith.mulf %57, %44 : vector<2x32xf32>
    %61 = arith.mulf %56, %58 : vector<2x32xf32>
    %62 = arith.addf %60, %61 : vector<2x32xf32>
    %63 = math.tanh %62 : vector<2x32xf32>
    %64 = arith.mulf %59, %63 : vector<2x32xf32>
    %c0_31 = arith.constant 0 : index
    %c0_32 = arith.constant 0 : index
    %c0_33 = arith.constant 0 : index
    %65 = vector.load %arg9[%c0_31, %c0_32, %c0_33] : memref<2x2x32xf32, #tpu.memory_space<vmem>>, vector<1x2x32xf32>
    %66 = vector.shape_cast %65 : vector<1x2x32xf32> to vector<2x32xf32>
    %67 = vector.shape_cast %64 : vector<2x32xf32> to vector<1x2x32xf32>
    tpu.vector_store %arg9[%c0_31, %c0_32, %c0_33], %67 {strides = array<i32>} : memref<2x2x32xf32, #tpu.memory_space<vmem>>, vector<1x2x32xf32>,
    %c0_34 = arith.constant 0 : index
    %c0_35 = arith.constant 0 : index
    %c0_36 = arith.constant 0 : index
    %68 = vector.load %arg10[%c0_34, %c0_35, %c0_36] : memref<2x2x32xf32, #tpu.memory_space<vmem>>, vector<1x2x32xf32>
    %69 = vector.shape_cast %68 : vector<1x2x32xf32> to vector<2x32xf32>
    %70 = vector.shape_cast %62 : vector<2x32xf32> to vector<1x2x32xf32>
    tpu.vector_store %arg10[%c0_34, %c0_35, %c0_36], %70 {strides = array<i32>} : memref<2x2x32xf32, #tpu.memory_space<vmem>>, vector<1x2x32xf32>,
    %c1_37 = arith.constant 1 : index
    %c0_38 = arith.constant 0 : index
    %c0_39 = arith.constant 0 : index
    %71 = vector.load %arg1[%c1_37, %c0_38, %c0_39] : memref<2x2x32xf32, #tpu.memory_space<vmem>>, vector<1x2x32xf32>
    %72 = vector.shape_cast %71 : vector<1x2x32xf32> to vector<2x32xf32>
    %c1_40 = arith.constant 1 : index
    %c0_41 = arith.constant 0 : index
    %c0_42 = arith.constant 0 : index
    %73 = vector.load %arg2[%c1_40, %c0_41, %c0_42] : memref<2x2x32xf32, #tpu.memory_space<vmem>>, vector<1x2x32xf32>
    %74 = vector.shape_cast %73 : vector<1x2x32xf32> to vector<2x32xf32>
    %75 = tpu.concatenate %64, %72 in 1 : vector<2x32xf32>, vector<2x32xf32> -> vector<2x64xf32>
    %c0_43 = arith.constant 0 : index
    %c0_44 = arith.constant 0 : index
    %76 = vector.load %arg7[%c0_43, %c0_44] : memref<64x128xf32, #tpu.memory_space<vmem>>, vector<64x128xf32>
    %cst_45 = arith.constant dense<0.000000e+00> : vector<2x128xf32>
    %77 = tpu.matmul %75, %76, %cst_45 {dimension_numbers = #tpu.dot_dimension_numbers<[1], [0], [0], [1], [0, 0, 1, 1], [], []>} : vector<2x64xf32>, vector<64x128xf32>, vector<2x128xf32> -> vector<2x128xf32>
    %78 = vector.broadcast %40 : vector<1x128xf32> to vector<2x128xf32>
    %79 = arith.addf %77, %78 : vector<2x128xf32>
    %80 = arith.negf %79 : vector<2x128xf32>
    %81 = math.exp %80 : vector<2x128xf32>
    %cst_46 = arith.constant 1.000000e+00 : f32
    %82 = vector.broadcast %cst_46 : f32 to vector<2x128xf32>
    %83 = arith.addf %82, %81 : vector<2x128xf32>
    %84 = arith.divf %82, %83 : vector<2x128xf32>
    %85 = math.tanh %79 : vector<2x128xf32>
    %86 = vector.extract_strided_slice %84 {offsets = [0, 0], sizes = [2, 32], strides = [1, 1]} : vector<2x128xf32> to vector<2x32xf32>
    %87 = vector.extract_strided_slice %84 {offsets = [0, 32], sizes = [2, 32], strides = [1, 1]} : vector<2x128xf32> to vector<2x32xf32>
    %88 = vector.extract_strided_slice %85 {offsets = [0, 64], sizes = [2, 32], strides = [1, 1]} : vector<2x128xf32> to vector<2x32xf32>
    %89 = vector.extract_strided_slice %84 {offsets = [0, 96], sizes = [2, 32], strides = [1, 1]} : vector<2x128xf32> to vector<2x32xf32>
    %90 = arith.mulf %87, %74 : vector<2x32xf32>
    %91 = arith.mulf %86, %88 : vector<2x32xf32>
    %92 = arith.addf %90, %91 : vector<2x32xf32>
    %93 = math.tanh %92 : vector<2x32xf32>
    %94 = arith.mulf %89, %93 : vector<2x32xf32>
    %c1_47 = arith.constant 1 : index
    %c0_48 = arith.constant 0 : index
    %c0_49 = arith.constant 0 : index
    %95 = vector.load %arg9[%c1_47, %c0_48, %c0_49] : memref<2x2x32xf32, #tpu.memory_space<vmem>>, vector<1x2x32xf32>
    %96 = vector.shape_cast %95 : vector<1x2x32xf32> to vector<2x32xf32>
    %97 = vector.shape_cast %94 : vector<2x32xf32> to vector<1x2x32xf32>
    tpu.vector_store %arg9[%c1_47, %c0_48, %c0_49], %97 {strides = array<i32>} : memref<2x2x32xf32, #tpu.memory_space<vmem>>, vector<1x2x32xf32>,
    %c1_50 = arith.constant 1 : index
    %c0_51 = arith.constant 0 : index
    %c0_52 = arith.constant 0 : index
    %98 = vector.load %arg10[%c1_50, %c0_51, %c0_52] : memref<2x2x32xf32, #tpu.memory_space<vmem>>, vector<1x2x32xf32>
    %99 = vector.shape_cast %98 : vector<1x2x32xf32> to vector<2x32xf32>
    %100 = vector.shape_cast %92 : vector<2x32xf32> to vector<1x2x32xf32>
    tpu.vector_store %arg10[%c1_50, %c0_51, %c0_52], %100 {strides = array<i32>} : memref<2x2x32xf32, #tpu.memory_space<vmem>>, vector<1x2x32xf32>,
    %c0_53 = arith.constant 0 : index
    %c0_54 = arith.constant 0 : index
    %101 = vector.load %arg11[%c0_53, %c0_54] : memref<2x8xf32, #tpu.memory_space<vmem>>, vector<2x8xf32>
    tpu.vector_store %arg11[%c0_53, %c0_54], %29 {strides = array<i32>} : memref<2x8xf32, #tpu.memory_space<vmem>>, vector<2x8xf32>,
    return
  }
}

</mosaic_0001>

<llo_original>
// kernel: attn_encoder_cell.1
$region0: #{attn_encoder_cell.1}
  #allocation0 [shape = 'u32[]', space=smem, size = 0x4, offset = 0x4, fixed_abs, tag = 'smem constant byte address 0x4 - core index']
  #allocation1 [shape = 'u32[144,128]{1,0:T(1,128)}', space=vmem, size = 0x12000, scoped, tag = 'internal scratch']
  %s0 = inlined_call_operand.vmem [shape: f32[2,8,32], index: 0, kind: input, shape index: {}]
  %s1 = inlined_call_operand.vmem [shape: f32[2,2,32], index: 1, kind: input, shape index: {}, may-alias: {1,9}]
  %s2 = inlined_call_operand.vmem [shape: f32[2,2,32], index: 2, kind: input, shape index: {}, may-alias: {2,10}]
  %s3 = inlined_call_operand.vmem [shape: f32[2,8], index: 3, kind: input, shape index: {}]
  %s4 = inlined_call_operand.vmem [shape: f32[32,32], index: 4, kind: input, shape index: {}]
  %s5 = inlined_call_operand.vmem [shape: f32[32,32], index: 5, kind: input, shape index: {}]
  %s6 = inlined_call_operand.vmem [shape: f32[1,32], index: 6, kind: input, shape index: {}]
  %s7 = inlined_call_operand.vmem [shape: f32[64,128], index: 7, kind: input, shape index: {}]
  %s8 = inlined_call_operand.vmem [shape: f32[1,128], index: 8, kind: input, shape index: {}]
  %s9 = inlined_call_operand.vmem [shape: f32[2,2,32], index: 9, kind: output, shape index: {0}, may-alias: {1,9}]
  %s10 = inlined_call_operand.vmem [shape: f32[2,2,32], index: 10, kind: output, shape index: {1}, may-alias: {2,10}]
  %s11 = inlined_call_operand.hbm [shape: f32[2,8], index: 11, kind: output, shape index: {2}]
  %12 = xla_tuple %s9, %s10, %s11
  %s13 = sld [smem:[#allocation0]]
  $region62: #{attn_encoder_cell.1} parent=0
    _
  %s15 = ssub.s32 1, %s13
  %s16 = scalar_select 0, %s15, %s13
  $region1: #{attn_encoder_cell.1} parent=0
    #allocation2 [shape = 'u8[1024]{0}', space=vmem, size = 0x400, scoped, tag = 'output window, operand 2, single buffered']
    #allocation3 [shape = 's32[1]{0}', space=sflag, size = 0x4, scoped, tag = 'scoped memory for attn_encoder_cell.1']
    %17 = vsyncpa [#allocation3], 0
    // Predicated region
    $region2: #{attn_encoder_cell.1} parent=1 // pred_check
      _
    $region3: #{attn_encoder_cell.1} parent=1 // pred_check_branch
      %19 = sbr.rel (0) target = $region5
    $region4: #{attn_encoder_cell.1} parent=1 // pred_region
      _
    $region5: #{attn_encoder_cell.1} parent=1 // pred_fallthru
      _
    // Predicated region
    $region6: #{attn_encoder_cell.1} parent=1 // pred_check
      _
    $region7: #{attn_encoder_cell.1} parent=1 // pred_check_branch
      %21 = sbr.rel (0) target = $region9
    $region8: #{attn_encoder_cell.1} parent=1 // pred_region
      _
    $region9: #{attn_encoder_cell.1} parent=1 // pred_fallthru
      _
    // Predicated region
    $region10: #{attn_encoder_cell.1} parent=1 // pred_check
      _
    $region11: #{attn_encoder_cell.1} parent=1 // pred_check_branch
      %23 = sbr.rel (0) target = $region13
    $region12: #{attn_encoder_cell.1} parent=1 // pred_region
      _
    $region13: #{attn_encoder_cell.1} parent=1 // pred_fallthru
      _
    // Predicated region
    $region14: #{attn_encoder_cell.1} parent=1 // pred_check
      _
    $region15: #{attn_encoder_cell.1} parent=1 // pred_check_branch
      %25 = sbr.rel (0) target = $region17
    $region16: #{attn_encoder_cell.1} parent=1 // pred_region
      _
    $region17: #{attn_encoder_cell.1} parent=1 // pred_fallthru
      _
    // Predicated region
    $region18: #{attn_encoder_cell.1} parent=1 // pred_check
      _
    $region19: #{attn_encoder_cell.1} parent=1 // pred_check_branch
      %27 = sbr.rel (0) target = $region21
    $region20: #{attn_encoder_cell.1} parent=1 // pred_region
      _
    $region21: #{attn_encoder_cell.1} parent=1 // pred_fallthru
      _
    // Predicated region
    $region22: #{attn_encoder_cell.1} parent=1 // pred_check
      _
    $region23: #{attn_encoder_cell.1} parent=1 // pred_check_branch
      %29 = sbr.rel (0) target = $region25
    $region24: #{attn_encoder_cell.1} parent=1 // pred_region
      _
    $region25: #{attn_encoder_cell.1} parent=1 // pred_fallthru
      _
    // Predicated region
    $region26: #{attn_encoder_cell.1} parent=1 // pred_check
      _
    $region27: #{attn_encoder_cell.1} parent=1 // pred_check_branch
      %31 = sbr.rel (0) target = $region29
    $region28: #{attn_encoder_cell.1} parent=1 // pred_region
      _
    $region29: #{attn_encoder_cell.1} parent=1 // pred_fallthru
      _
    // Predicated region
    $region30: #{attn_encoder_cell.1} parent=1 // pred_check
      _
    $region31: #{attn_encoder_cell.1} parent=1 // pred_check_branch
      %33 = sbr.rel (0) target = $region33
    $region32: #{attn_encoder_cell.1} parent=1 // pred_region
      _
    $region33: #{attn_encoder_cell.1} parent=1 // pred_fallthru
      _
    // Predicated region
    $region34: #{attn_encoder_cell.1} parent=1 // pred_check
      _
    $region35: #{attn_encoder_cell.1} parent=1 // pred_check_branch
      %35 = sbr.rel (0) target = $region37
    $region36: #{attn_encoder_cell.1} parent=1 // pred_region
      _
    $region37: #{attn_encoder_cell.1} parent=1 // pred_fallthru
      _
    %v36 = vld [vmem:[%s0] sm:$0xff]
    %v37 = vld [vmem:[%s0 + $0x8] sm:$0xff]
    %s38 = scalar_lea.vmem %s1, 2
    %v39 = vld [vmem:[%s38] sm:$0x3]
    %v40 = vld [vmem:[%s4] sm:$0xff]
    %v41 = vld [vmem:[%s4 + $0x8] sm:$0xff]
    %v42 = vld [vmem:[%s4 + $0x10] sm:$0xff]
    %v43 = vld [vmem:[%s4 + $0x18] sm:$0xff]
    %vm44 = vcmask 261120
    %v46 = vsel %vm44, %v36, 0
    %v49 = vsel %vm44, %v37, 0
    %51 = vmatprep.subr.mxu0 0.0
    %52 = vmatpush1.msra.mxu0 0.0
    %53 = vmatprep.subr.mxu0 0.0
    %54 = vmatpush1.msra.mxu0 0.0
    %55 = vmatprep.subr.mxu0 0.0
    %56 = vmatpush1.msra.mxu0 0.0
    %57 = vmatprep.subr.mxu0 0.0
    %58 = vmatpush1.msra.mxu0 0.0
    %59 = vmatprep.subr.mxu0 0.0
    %60 = vmatpush1.msra.mxu0 0.0
    %61 = vmatprep.subr.mxu0 0.0
    %62 = vmatpush1.msra.mxu0 0.0
    %63 = vmatprep.subr.mxu0 0.0
    %64 = vmatpush1.msra.mxu0 0.0
    %65 = vmatprep.subr.mxu0 0.0
    %66 = vmatpush1.msra.mxu0 0.0
    %67 = vmatprep.subr.mxu0 0.0
    %68 = vmatpush1.msra.mxu0 0.0
    %69 = vmatprep.subr.mxu0 0.0
    %70 = vmatpush1.msra.mxu0 0.0
    %71 = vmatprep.subr.mxu0 0.0
    %72 = vmatpush1.msra.mxu0 0.0
    %73 = vmatprep.subr.mxu0 0.0
    %74 = vmatpush1.msra.mxu0 0.0
    %75 = vmatprep.subr.mxu0 0.0
    %76 = vmatpush1.msra.mxu0 %v43
    %77 = vmatprep.subr.mxu0 0.0
    %78 = vmatpush1.msra.mxu0 %v42
    %79 = vmatprep.subr.mxu0 0.0
    %80 = vmatpush1.msra.mxu0 %v41
    %81 = vmatprep.subr.mxu0 0.0
    %82 = vmatpush1.msra.mxu0 %v40
    %83 = vmatprep.subr.mxu0 0.0
    %84 = vmatpush2.msra.mxu0 0.0
    %85 = vmatprep.subr.mxu0 0.0
    %86 = vmatpush2.msra.mxu0 0.0
    %87 = vmatprep.subr.mxu0 0.0
    %88 = vmatpush2.msra.mxu0 0.0
    %89 = vmatprep.subr.mxu0 0.0
    %90 = vmatpush2.msra.mxu0 0.0
    %91 = vmatprep.subr.mxu0 0.0
    %92 = vmatpush2.msra.mxu0 0.0
    %93 = vmatprep.subr.mxu0 0.0
    %94 = vmatpush2.msra.mxu0 0.0
    %95 = vmatprep.subr.mxu0 0.0
    %96 = vmatpush2.msra.mxu0 0.0
    %97 = vmatprep.subr.mxu0 0.0
    %98 = vmatpush2.msra.mxu0 0.0
    %99 = vmatprep.subr.mxu0 0.0
    %100 = vmatpush2.msra.mxu0 0.0
    %101 = vmatprep.subr.mxu0 0.0
    %102 = vmatpush2.msra.mxu0 0.0
    %103 = vmatprep.subr.mxu0 0.0
    %104 = vmatpush2.msra.mxu0 0.0
    %105 = vmatprep.subr.mxu0 0.0
    %106 = vmatpush2.msra.mxu0 0.0
    %107 = vmatprep.subr.mxu0 0.0
    %108 = vmatpush2.msra.mxu0 0.0
    %109 = vmatprep.subr.mxu0 0.0
    %110 = vmatpush2.msra.mxu0 0.0
    %111 = vmatprep.subr.mxu0 0.0
    %112 = vmatpush2.msra.mxu0 0.0
    %113 = vmatprep.subr.mxu0 0.0
    %114 = vmatpush2.msra.mxu0 0.0
    %115 = vmatprep.mubr.f32.mxu0 0.0
    %116 = vmatmul.mubr.f32.gmra.mxu0 %v46
    %v117 = vpop.f32.mrf.mxu0
    %v118 = vadd.f32 0.0, %v117
    %v119 = vpop.f32.mrf.mxu0
    %120 = vmatprep.mubr.f32.mxu0 0.0
    %121 = vmatmul.mubr.f32.gmra.mxu0 %v49
    %v122 = vpop.f32.mrf.mxu0
    %v123 = vadd.f32 0.0, %v122
    %v124 = vpop.f32.mrf.mxu0
    %125 = vdwg.mxu0
    %v126 = vld [vmem:[%s5] sm:$0xff]
    %v127 = vld [vmem:[%s5 + $0x8] sm:$0xff]
    %v128 = vld [vmem:[%s5 + $0x10] sm:$0xff]
    %v129 = vld [vmem:[%s5 + $0x18] sm:$0xff]
    %v131 = vsel %vm44, %v39, 0
    %133 = vmatprep.subr.mxu0 0.0
    %134 = vmatpush1.msra.mxu0 0.0
    %135 = vmatprep.subr.mxu0 0.0
    %136 = vmatpush1.msra.mxu0 0.0
    %137 = vmatprep.subr.mxu0 0.0
    %138 = vmatpush1.msra.mxu0 0.0
    %139 = vmatprep.subr.mxu0 0.0
    %140 = vmatpush1.msra.mxu0 0.0
    %141 = vmatprep.subr.mxu0 0.0
    %142 = vmatpush1.msra.mxu0 0.0
    %143 = vmatprep.subr.mxu0 0.0
    %144 = vmatpush1.msra.mxu0 0.0
    %145 = vmatprep.subr.mxu0 0.0
    %146 = vmatpush1.msra.mxu0 0.0
    %147 = vmatprep.subr.mxu0 0.0
    %148 = vmatpush1.msra.mxu0 0.0
    %149 = vmatprep.subr.mxu0 0.0
    %150 = vmatpush1.msra.mxu0 0.0
    %151 = vmatprep.subr.mxu0 0.0
    %152 = vmatpush1.msra.mxu0 0.0
    %153 = vmatprep.subr.mxu0 0.0
    %154 = vmatpush1.msra.mxu0 0.0
    %155 = vmatprep.subr.mxu0 0.0
    %156 = vmatpush1.msra.mxu0 0.0
    %157 = vmatprep.subr.mxu0 0.0
    %158 = vmatpush1.msra.mxu0 %v129
    %159 = vmatprep.subr.mxu0 0.0
    %160 = vmatpush1.msra.mxu0 %v128
    %161 = vmatprep.subr.mxu0 0.0
    %162 = vmatpush1.msra.mxu0 %v127
    %163 = vmatprep.subr.mxu0 0.0
    %164 = vmatpush1.msra.mxu0 %v126
    %165 = vmatprep.subr.mxu0 0.0
    %166 = vmatpush2.msra.mxu0 0.0
    %167 = vmatprep.subr.mxu0 0.0
    %168 = vmatpush2.msra.mxu0 0.0
    %169 = vmatprep.subr.mxu0 0.0
    %170 = vmatpush2.msra.mxu0 0.0
    %171 = vmatprep.subr.mxu0 0.0
    %172 = vmatpush2.msra.mxu0 0.0
    %173 = vmatprep.subr.mxu0 0.0
    %174 = vmatpush2.msra.mxu0 0.0
    %175 = vmatprep.subr.mxu0 0.0
    %176 = vmatpush2.msra.mxu0 0.0
    %177 = vmatprep.subr.mxu0 0.0
    %178 = vmatpush2.msra.mxu0 0.0
    %179 = vmatprep.subr.mxu0 0.0
    %180 = vmatpush2.msra.mxu0 0.0
    %181 = vmatprep.subr.mxu0 0.0
    %182 = vmatpush2.msra.mxu0 0.0
    %183 = vmatprep.subr.mxu0 0.0
    %184 = vmatpush2.msra.mxu0 0.0
    %185 = vmatprep.subr.mxu0 0.0
    %186 = vmatpush2.msra.mxu0 0.0
    %187 = vmatprep.subr.mxu0 0.0
    %188 = vmatpush2.msra.mxu0 0.0
    %189 = vmatprep.subr.mxu0 0.0
    %190 = vmatpush2.msra.mxu0 0.0
    %191 = vmatprep.subr.mxu0 0.0
    %192 = vmatpush2.msra.mxu0 0.0
    %193 = vmatprep.subr.mxu0 0.0
    %194 = vmatpush2.msra.mxu0 0.0
    %195 = vmatprep.subr.mxu0 0.0
    %196 = vmatpush2.msra.mxu0 0.0
    %197 = vmatprep.mubr.f32.mxu0 0.0
    %198 = vmatmul.mubr.f32.gmra.mxu0 %v131
    %v199 = vpop.f32.mrf.mxu0
    %v200 = vadd.f32 0.0, %v199
    %v201 = vpop.f32.mrf.mxu0
    %202 = vdwg.mxu0
    %v205 = vunpack.c.l.s4 1966171168
    %v206 = vunpack.c.0.s8 %v205
    %v207 = vlaneseq
    %v208 = vshrl.u32 %v207, 7
    %v209 = vsub.s32 %v206, %v208
    %v210 = vrot.slane %v200, %v209
    %v211 = vcombine.high %v210, %v210
    %v213 = vunpack.c.l.s4 1966171168
    %v214 = vunpack.c.0.s8 %v213
    %v215 = vlaneseq
    %v216 = vshrl.u32 %v215, 7
    %v217 = vsub.s32 %v214, %v216
    %v218 = vrot.slane %v210, %v217
    %v220 = vunpack.c.l.s4 1966171168
    %v221 = vunpack.c.0.s8 %v220
    %v222 = vlaneseq
    %v223 = vshrl.u32 %v222, 7
    %v224 = vsub.s32 %v221, %v223
    %v225 = vrot.slane %v211, %v224
    %v226 = vlaneseq
    %v227 = vshrl.u32 %v226, 7
    %v228 = vsub.s32 0, %v227
    %v229 = vrot.slane %v218, %v228
    %v230 = vlaneseq
    %v231 = vshrl.u32 %v230, 7
    %v232 = vsub.s32 0, %v231
    %v233 = vrot.slane %v225, %v232
    %v236 = vadd.f32 %v118, %v229
    %v237 = vadd.f32 %v123, %v233
    %v238 = vtanh.pop %v236
    %v239 = vtanh.pop %v237
    %v240 = vld [vmem:[%s6] sm:$0x1]
    %v242 = vlaneseq
    %v243 = vshrl.u32 %v242, 7
    %v244 = vsub.s32 0, %v243
    %v245 = vrot.slane %v240, %v244
    %v247 = vmul.f32 %v238, %v245
    %v248 = vmul.f32 %v239, %v245
    %v249 = vsel %vm44, %v247, 0.0
    %250 = vadd.xlane.f32.xlu0 %v249
    %v251 = vpop.xlane.xlu0 %250
    %v252 = vsel %vm44, %v248, 0.0
    %253 = vadd.xlane.f32.xlu0 %v252
    %v254 = vpop.xlane.xlu0 %253
    %v257 = vlaneseq
    %v258 = vand.u32 %v257, 127
    %v259 = vlaneseq
    %v260 = vshrl.u32 %v259, 7
    %v261 = vsub.s32 %v258, %v260
    %v262 = vrot.slane %v251, %v261
    %v263 = vlaneseq
    %v264 = vshrl.u32 %v263, 7
    %v265 = vsub.s32 %v258, %v264
    %v266 = vrot.slane %v254, %v265
    %vm267 = vcmask 1041409
    %v268 = vsel %vm267, %v266, %v262
    %vm270 = vcmask 58368
    %v271 = vsel %vm270, %v268, -inf
    %272 = vmax.xlane.f32.xlu0 %v271
    %v273 = vpop.xlane.xlu0 %272
    %v275 = vlaneseq
    %v276 = vshrl.u32 %v275, 7
    %v277 = vsub.s32 0, %v276
    %v278 = vrot.slane %v273, %v277
    %v279 = vlaneseq
    %v280 = vshrl.u32 %v279, 7
    %v281 = vsub.s32 1, %v280
    %v282 = vrot.slane %v273, %v281
    %v285 = vsub.f32 %v251, %v278
    %v286 = vsub.f32 %v254, %v282
    %v287 = vmul.f32 %v285, 1.442695
    %v288 = vpow.pop %v287
    %v289 = vmul.f32 %v286, 1.442695
    %v290 = vpow.pop %v289
    %293 = vset.pattern.permute.xlu0 0
    %294 = vperm.xlu0 %293, %v288
    %v295 = vpop.permute.xlu0 %294
    %296 = vset.pattern.permute.xlu0 0
    %297 = vperm.xlu0 %296, %v290
    %v298 = vpop.permute.xlu0 %297
    %v299 = vlaneseq
    %v300 = vshrl.u32 %v299, 7
    %v301 = vsub.s32 %v258, %v300
    %v302 = vrot.slane %v295, %v301
    %v303 = vlaneseq
    %v304 = vshrl.u32 %v303, 7
    %v305 = vsub.s32 %v258, %v304
    %v306 = vrot.slane %v298, %v305
    %v307 = vsel %vm267, %v306, %v302
    %v309 = vsel %vm270, %v307, 0.0
    %310 = vadd.xlane.f32.xlu0 %v309
    %v311 = vpop.xlane.xlu0 %310
    %v313 = vlaneseq
    %v314 = vshrl.u32 %v313, 7
    %v315 = vsub.s32 0, %v314
    %v316 = vrot.slane %v311, %v315
    %v317 = vlaneseq
    %v318 = vshrl.u32 %v317, 7
    %v319 = vsub.s32 1, %v318
    %v320 = vrot.slane %v311, %v319
    %v323 = vrcp.pop %v316
    %v324 = vmul.f32 %v288, %v323
    %v325 = vrcp.pop %v320
    %v326 = vmul.f32 %v290, %v325
    %v327 = vld [vmem:[%s3] sm:$0x3]
    %v328 = vrsqrt.pop %v327
    %v329 = vmul.f32 %v327, %v328
    %vm330 = vcmp.eq.f32.partialorder %v327, inf
    %v331 = vsel %vm330, %v327, %v329
    %vm332 = vcmp.eq.f32.partialorder %v327, 0.0
    %v333 = vand.u32 %v327, 2147483648
    %v334 = vsel %vm332, %v333, %v331
    %v336 = vlaneseq
    %v337 = vshrl.u32 %v336, 7
    %v338 = vsub.s32 0, %v337
    %v339 = vrot.slane %v334, %v338
    %341 = vbcast.lane.b32.xlu0 %v339, 256
    %v342 = vpop.permute.xlu0 %341
    %v343 = vlaneseq
    %v344 = vshrl.u32 %v343, 7
    %v345 = vsub.s32 1, %v344
    %v346 = vrot.slane %v334, %v345
    %348 = vbcast.lane.b32.xlu0 %v346, 256
    %v349 = vpop.permute.xlu0 %348
    %v352 = vmul.f32 %v324, %v342
    %v353 = vmul.f32 %v326, %v349
    %355 = vset.pattern.permute.xlu0 0
    %356 = vperm.xlu0 %355, %v352
    %v357 = vpop.permute.xlu0 %356
    %360 = vset.pattern.permute.xlu0 0
    %361 = vperm.xlu0 %360, %v353
    %v362 = vpop.permute.xlu0 %361
    %v364 = vmul.f32 %v357, %v36
    %v365 = vmul.f32 %v362, %v37
    %v366 = vsel %vm44, %v364, 0.0
    %v367 = vrot.slane %v366, 4
    %v368 = vadd.f32 %v366, %v367
    %v369 = vrot.slane %v368, 2
    %v370 = vadd.f32 %v368, %v369
    %v371 = vrot.slane %v370, 1
    %v372 = vadd.f32 %v370, %v371
    %v373 = vsel %vm44, %v365, 0.0
    %v374 = vrot.slane %v373, 4
    %v375 = vadd.f32 %v373, %v374
    %v376 = vrot.slane %v375, 2
    %v377 = vadd.f32 %v375, %v376
    %v378 = vrot.slane %v377, 1
    %v379 = vadd.f32 %v377, %v378
    %v380 = vlaneseq
    %v381 = vshrl.u32 %v380, 7
    %v382 = vsub.s32 %v258, %v381
    %v383 = vrot.slane %v357, %v382
    %v384 = vlaneseq
    %v385 = vshrl.u32 %v384, 7
    %v386 = vsub.s32 %v258, %v385
    %v387 = vrot.slane %v362, %v386
    %v388 = vsel %vm267, %v387, %v383
    %v390 = vsel %vm270, %v388, 0.0
    %391 = vadd.xlane.f32.xlu0 %v390
    %v392 = vpop.xlane.xlu0 %391
    %v393 = vmax.f32 %v392, 1e-05
    %v395 = vrot.slane %v393, 1
    %v398 = vrcp.pop %v393
    %v399 = vmul.f32 %v372, %v398
    %v400 = vrcp.pop %v395
    %v401 = vmul.f32 %v379, %v400
    %v402 = vld [vmem:[%s8] sm:$0x1]
    %v403 = vld [vmem:[%s1] sm:$0x3]
    %v404 = vld [vmem:[%s2] sm:$0x3]
    %v407 = vrot.slane %v401, 7
    %v408 = vsel %vm267, %v407, %v399
    %411 = vrot.lane.b32.xlu0 %v403, 32
    %v412 = vpop.permute.xlu0 %411
    %v414 = vsel %vm44, %v408, %v412
    %v415 = vld [vmem:[%s7] sm:$0xff]
    %v416 = vld [vmem:[%s7 + $0x8] sm:$0xff]
    %v417 = vld [vmem:[%s7 + $0x10] sm:$0xff]
    %v418 = vld [vmem:[%s7 + $0x18] sm:$0xff]
    %v419 = vld [vmem:[%s7 + $0x20] sm:$0xff]
    %v420 = vld [vmem:[%s7 + $0x28] sm:$0xff]
    %v421 = vld [vmem:[%s7 + $0x30] sm:$0xff]
    %v422 = vld [vmem:[%s7 + $0x38] sm:$0xff]
    %v424 = vlaneseq
    %v425 = vshrl.u32 %v424, 7
    %v426 = vsub.s32 0, %v425
    %v427 = vrot.slane %v402, %v426
    %vm429 = vcmask 523264
    %v431 = vsel %vm429, %v414, 0
    %433 = vmatprep.subr.mxu0 0.0
    %434 = vmatpush1.msra.mxu0 0.0
    %435 = vmatprep.subr.mxu0 0.0
    %436 = vmatpush1.msra.mxu0 0.0
    %437 = vmatprep.subr.mxu0 0.0
    %438 = vmatpush1.msra.mxu0 0.0
    %439 = vmatprep.subr.mxu0 0.0
    %440 = vmatpush1.msra.mxu0 0.0
    %441 = vmatprep.subr.mxu0 0.0
    %442 = vmatpush1.msra.mxu0 0.0
    %443 = vmatprep.subr.mxu0 0.0
    %444 = vmatpush1.msra.mxu0 0.0
    %445 = vmatprep.subr.mxu0 0.0
    %446 = vmatpush1.msra.mxu0 0.0
    %447 = vmatprep.subr.mxu0 0.0
    %448 = vmatpush1.msra.mxu0 0.0
    %449 = vmatprep.subr.mxu0 0.0
    %450 = vmatpush1.msra.mxu0 %v422
    %451 = vmatprep.subr.mxu0 0.0
    %452 = vmatpush1.msra.mxu0 %v421
    %453 = vmatprep.subr.mxu0 0.0
    %454 = vmatpush1.msra.mxu0 %v420
    %455 = vmatprep.subr.mxu0 0.0
    %456 = vmatpush1.msra.mxu0 %v419
    %457 = vmatprep.subr.mxu0 0.0
    %458 = vmatpush1.msra.mxu0 %v418
    %459 = vmatprep.subr.mxu0 0.0
    %460 = vmatpush1.msra.mxu0 %v417
    %461 = vmatprep.subr.mxu0 0.0
    %462 = vmatpush1.msra.mxu0 %v416
    %463 = vmatprep.subr.mxu0 0.0
    %464 = vmatpush1.msra.mxu0 %v415
    %465 = vmatprep.subr.mxu0 0.0
    %466 = vmatpush2.msra.mxu0 0.0
    %467 = vmatprep.subr.mxu0 0.0
    %468 = vmatpush2.msra.mxu0 0.0
    %469 = vmatprep.subr.mxu0 0.0
    %470 = vmatpush2.msra.mxu0 0.0
    %471 = vmatprep.subr.mxu0 0.0
    %472 = vmatpush2.msra.mxu0 0.0
    %473 = vmatprep.subr.mxu0 0.0
    %474 = vmatpush2.msra.mxu0 0.0
    %475 = vmatprep.subr.mxu0 0.0
    %476 = vmatpush2.msra.mxu0 0.0
    %477 = vmatprep.subr.mxu0 0.0
    %478 = vmatpush2.msra.mxu0 0.0
    %479 = vmatprep.subr.mxu0 0.0
    %480 = vmatpush2.msra.mxu0 0.0
    %481 = vmatprep.subr.mxu0 0.0
    %482 = vmatpush2.msra.mxu0 0.0
    %483 = vmatprep.subr.mxu0 0.0
    %484 = vmatpush2.msra.mxu0 0.0
    %485 = vmatprep.subr.mxu0 0.0
    %486 = vmatpush2.msra.mxu0 0.0
    %487 = vmatprep.subr.mxu0 0.0
    %488 = vmatpush2.msra.mxu0 0.0
    %489 = vmatprep.subr.mxu0 0.0
    %490 = vmatpush2.msra.mxu0 0.0
    %491 = vmatprep.subr.mxu0 0.0
    %492 = vmatpush2.msra.mxu0 0.0
    %493 = vmatprep.subr.mxu0 0.0
    %494 = vmatpush2.msra.mxu0 0.0
    %495 = vmatprep.subr.mxu0 0.0
    %496 = vmatpush2.msra.mxu0 0.0
    %497 = vmatprep.mubr.f32.mxu0 0.0
    %498 = vmatmul.mubr.f32.gmra.mxu0 %v431
    %v499 = vpop.f32.mrf.mxu0
    %v500 = vadd.f32 %v427, %v499
    %v501 = vpop.f32.mrf.mxu0
    %502 = vdwg.mxu0
    %v503 = vxor.u32 %v500, 2147483648
    %v504 = vmul.f32 %v503, 1.442695
    %v505 = vpow.pop %v504
    %v506 = vadd.f32 %v505, 1.0
    %v507 = vrcp.pop %v506
    %v508 = vmul.f32 1.0, %v507
    %v509 = vtanh.pop %v500
    %511 = vrot.lane.b32.xlu0 %v404, 32
    %v512 = vpop.permute.xlu0 %511
    %v514 = vmul.f32 %v508, %v512
    %516 = vrot.lane.b32.xlu0 %v509, 64
    %v517 = vpop.permute.xlu0 %516
    %v519 = vmul.f32 %v508, %v517
    %521 = vrot.lane.b32.xlu0 %v519, 32
    %v522 = vpop.permute.xlu0 %521
    %v524 = vadd.f32 %v514, %v522
    %v525 = vtanh.pop %v524
    %527 = vrot.lane.b32.xlu0 %v525, 64
    %v528 = vpop.permute.xlu0 %527
    %v530 = vmul.f32 %v508, %v528
    %532 = vrot.lane.b32.xlu0 %v530, 32
    %v533 = vpop.permute.xlu0 %532
    %vm535 = vcmask 254976
    %536 = vst.msk [vmem:[%s9] sm:$0x3] %vm535, %v533
    %538 = vrot.lane.b32.xlu0 %v524, 96
    %v539 = vpop.permute.xlu0 %538
    %541 = vst.msk [vmem:[%s10] sm:$0x3] %vm535, %v539
    %v542 = vld [vmem:[%s38] sm:$0x3]
    %s543 = scalar_lea.vmem %s2, 2
    %v544 = vld [vmem:[%s543] sm:$0x3]
    %546 = vrot.lane.b32.xlu0 %v542, 32
    %v547 = vpop.permute.xlu0 %546
    %v549 = vsel %vm44, %v533, %v547
    %v550 = vld [vmem:[%s7] sm:$0xff]
    %v551 = vld [vmem:[%s7 + $0x8] sm:$0xff]
    %v552 = vld [vmem:[%s7 + $0x10] sm:$0xff]
    %v553 = vld [vmem:[%s7 + $0x18] sm:$0xff]
    %v554 = vld [vmem:[%s7 + $0x20] sm:$0xff]
    %v555 = vld [vmem:[%s7 + $0x28] sm:$0xff]
    %v556 = vld [vmem:[%s7 + $0x30] sm:$0xff]
    %v557 = vld [vmem:[%s7 + $0x38] sm:$0xff]
    %v559 = vsel %vm429, %v549, 0
    %561 = vmatprep.subr.mxu0 0.0
    %562 = vmatpush1.msra.mxu0 0.0
    %563 = vmatprep.subr.mxu0 0.0
    %564 = vmatpush1.msra.mxu0 0.0
    %565 = vmatprep.subr.mxu0 0.0
    %566 = vmatpush1.msra.mxu0 0.0
    %567 = vmatprep.subr.mxu0 0.0
    %568 = vmatpush1.msra.mxu0 0.0
    %569 = vmatprep.subr.mxu0 0.0
    %570 = vmatpush1.msra.mxu0 0.0
    %571 = vmatprep.subr.mxu0 0.0
    %572 = vmatpush1.msra.mxu0 0.0
    %573 = vmatprep.subr.mxu0 0.0
    %574 = vmatpush1.msra.mxu0 0.0
    %575 = vmatprep.subr.mxu0 0.0
    %576 = vmatpush1.msra.mxu0 0.0
    %577 = vmatprep.subr.mxu0 0.0
    %578 = vmatpush1.msra.mxu0 %v557
    %579 = vmatprep.subr.mxu0 0.0
    %580 = vmatpush1.msra.mxu0 %v556
    %581 = vmatprep.subr.mxu0 0.0
    %582 = vmatpush1.msra.mxu0 %v555
    %583 = vmatprep.subr.mxu0 0.0
    %584 = vmatpush1.msra.mxu0 %v554
    %585 = vmatprep.subr.mxu0 0.0
    %586 = vmatpush1.msra.mxu0 %v553
    %587 = vmatprep.subr.mxu0 0.0
    %588 = vmatpush1.msra.mxu0 %v552
    %589 = vmatprep.subr.mxu0 0.0
    %590 = vmatpush1.msra.mxu0 %v551
    %591 = vmatprep.subr.mxu0 0.0
    %592 = vmatpush1.msra.mxu0 %v550
    %593 = vmatprep.subr.mxu0 0.0
    %594 = vmatpush2.msra.mxu0 0.0
    %595 = vmatprep.subr.mxu0 0.0
    %596 = vmatpush2.msra.mxu0 0.0
    %597 = vmatprep.subr.mxu0 0.0
    %598 = vmatpush2.msra.mxu0 0.0
    %599 = vmatprep.subr.mxu0 0.0
    %600 = vmatpush2.msra.mxu0 0.0
    %601 = vmatprep.subr.mxu0 0.0
    %602 = vmatpush2.msra.mxu0 0.0
    %603 = vmatprep.subr.mxu0 0.0
    %604 = vmatpush2.msra.mxu0 0.0
    %605 = vmatprep.subr.mxu0 0.0
    %606 = vmatpush2.msra.mxu0 0.0
    %607 = vmatprep.subr.mxu0 0.0
    %608 = vmatpush2.msra.mxu0 0.0
    %609 = vmatprep.subr.mxu0 0.0
    %610 = vmatpush2.msra.mxu0 0.0
    %611 = vmatprep.subr.mxu0 0.0
    %612 = vmatpush2.msra.mxu0 0.0
    %613 = vmatprep.subr.mxu0 0.0
    %614 = vmatpush2.msra.mxu0 0.0
    %615 = vmatprep.subr.mxu0 0.0
    %616 = vmatpush2.msra.mxu0 0.0
    %617 = vmatprep.subr.mxu0 0.0
    %618 = vmatpush2.msra.mxu0 0.0
    %619 = vmatprep.subr.mxu0 0.0
    %620 = vmatpush2.msra.mxu0 0.0
    %621 = vmatprep.subr.mxu0 0.0
    %622 = vmatpush2.msra.mxu0 0.0
    %623 = vmatprep.subr.mxu0 0.0
    %624 = vmatpush2.msra.mxu0 0.0
    %625 = vmatprep.mubr.f32.mxu0 0.0
    %626 = vmatmul.mubr.f32.gmra.mxu0 %v559
    %v627 = vpop.f32.mrf.mxu0
    %v628 = vadd.f32 %v427, %v627
    %v629 = vpop.f32.mrf.mxu0
    %630 = vdwg.mxu0
    %v631 = vxor.u32 %v628, 2147483648
    %v632 = vmul.f32 %v631, 1.442695
    %v633 = vpow.pop %v632
    %v634 = vadd.f32 %v633, 1.0
    %v635 = vrcp.pop %v634
    %v636 = vmul.f32 1.0, %v635
    %v637 = vtanh.pop %v628
    %639 = vrot.lane.b32.xlu0 %v544, 32
    %v640 = vpop.permute.xlu0 %639
    %v642 = vmul.f32 %v636, %v640
    %644 = vrot.lane.b32.xlu0 %v637, 64
    %v645 = vpop.permute.xlu0 %644
    %v647 = vmul.f32 %v636, %v645
    %649 = vrot.lane.b32.xlu0 %v647, 32
    %v650 = vpop.permute.xlu0 %649
    %v652 = vadd.f32 %v642, %v650
    %v653 = vtanh.pop %v652
    %655 = vrot.lane.b32.xlu0 %v653, 64
    %v656 = vpop.permute.xlu0 %655
    %v658 = vmul.f32 %v636, %v656
    %660 = vrot.lane.b32.xlu0 %v658, 32
    %v661 = vpop.permute.xlu0 %660
    %s663 = scalar_lea.vmem %s9, 2
    %664 = vst.msk [vmem:[%s663] sm:$0x3] %vm535, %v661
    %666 = vrot.lane.b32.xlu0 %v652, 96
    %v667 = vpop.permute.xlu0 %666
    %s669 = scalar_lea.vmem %s10, 2
    %670 = vst.msk [vmem:[%s669] sm:$0x3] %vm535, %v667
    %671 = vst.msk [vmem:[#allocation2] sm:$0x3] %vm270, %v388
    // Predicated region
    $region38: #{attn_encoder_cell.1} parent=1 // pred_check
      _
    $region39: #{attn_encoder_cell.1} parent=1 // pred_check_branch
      %673 = sbr.rel (0) target = $region41
    $region40: #{attn_encoder_cell.1} parent=1 // pred_region
      _
    $region41: #{attn_encoder_cell.1} parent=1 // pred_fallthru
      _
    // Predicated region
    $region42: #{attn_encoder_cell.1} parent=1 // pred_check
      _
    $region43: #{attn_encoder_cell.1} parent=1 // pred_check_branch
      %675 = sbr.rel (0) target = $region45
    $region44: #{attn_encoder_cell.1} parent=1 // pred_region
      _
    $region45: #{attn_encoder_cell.1} parent=1 // pred_fallthru
      _
    // Predicated region
    $region46: #{attn_encoder_cell.1} parent=1 // pred_check
      _
    $region47: #{attn_encoder_cell.1} parent=1 // pred_check_branch
      %677 = sbr.rel (0) target = $region49
    $region48: #{attn_encoder_cell.1} parent=1 // pred_region
      %s679 = ssub.s32 32, 32
      %680 = vsyncadd [#allocation3], %s679
      %s682 = sshll.u32 [#allocation2], 4
      %s683 = int_to_ptr.vmem [resolvable:$true] %s682
      %685 = dma.vmem_to_hbm [thread:$0]  %s683, 32, %s11, [#allocation3]
    $region49: #{attn_encoder_cell.1} parent=1 // pred_fallthru
      _
    // Predicated region
    $region50: #{attn_encoder_cell.1} parent=1 // pred_check
      _
    $region51: #{attn_encoder_cell.1} parent=1 // pred_check_branch
      %687 = sbr.rel (0) target = $region53
    $region52: #{attn_encoder_cell.1} parent=1 // pred_region
      _
    $region53: #{attn_encoder_cell.1} parent=1 // pred_fallthru
      _
    // Predicated region
    $region54: #{attn_encoder_cell.1} parent=1 // pred_check
      _
    $region55: #{attn_encoder_cell.1} parent=1 // pred_check_branch
      %689 = sbr.rel (0) target = $region57
    $region56: #{attn_encoder_cell.1} parent=1 // pred_region
      _
    $region57: #{attn_encoder_cell.1} parent=1 // pred_fallthru
      _
    // Predicated region
    $region58: #{attn_encoder_cell.1} parent=1 // pred_check
      _
    $region59: #{attn_encoder_cell.1} parent=1 // pred_check_branch
      %691 = sbr.rel (0) target = $region61
    $region60: #{attn_encoder_cell.1} parent=1 // pred_region
      %692 = dma.done [#allocation3], 32
    $region61: #{attn_encoder_cell.1} parent=1 // pred_fallthru
      _
    %693 = vsyncpa [#allocation3], 1

</llo_original>
